<compile_context>
chip_gen: v7x
topology: tpu7x:2x2x1
jax: 0.10.0
libtpu: 0.0.40
codegen_flags: <defaults>
</compile_context>

<pallas_src>
import functools

import jax
import jax.numpy as jnp
from jax.experimental import pallas as pl
from jax.experimental.pallas import tpu as pltpu


def _round_up(x, m):
    return (x + m - 1) // m * m


# ---------------------------------------------------------------------------
# Kernel bodies
# ---------------------------------------------------------------------------

def _ggc_body(text_ref, dep_ref, lat_ref, w_ref, b_ref, out_ref, *,
              lambda_p, use_bias):
    Bt, N, Din_p = text_ref.shape
    Dout_p = w_ref.shape[1]

    # hidden = text @ W as one fat (Bt*N, Din_p) x (Din_p, Dout_p) MXU matmul.
    text2d = text_ref[...].reshape(Bt * N, Din_p)
    hidden_f32 = jnp.dot(text2d, w_ref[...], preferred_element_type=jnp.float32)
    # cast once to the (possibly low-precision) MXU input dtype for the
    # adjacency matmuls; accumulation stays f32.
    hidden_mx = hidden_f32.astype(dep_ref.dtype).reshape(Bt, N, Dout_p)

    # hoist bias broadcast out of both adjacency branches.
    bias_row = b_ref[0].astype(jnp.float32) if use_bias else None

    def adj_branch(adj_ref):
        adj = adj_ref[...]                                         # (Bt, N, N)
        denom = jnp.sum(adj.astype(jnp.float32), axis=-1, keepdims=True) + 1.0
        inv = pl.reciprocal(denom, approx=False)                   # (Bt, N, 1)
        out = jnp.einsum('bij,bjd->bid', adj, hidden_mx,
                         preferred_element_type=jnp.float32) * inv
        if use_bias:
            out = out + bias_row
        return out

    dep_out = adj_branch(dep_ref)
    final = dep_out
    if lat_ref is not None:
        lat_out = adj_branch(lat_ref)
        gate = (1.0 - lambda_p) * jax.nn.sigmoid(lat_out)
        final = (1.0 - gate) * dep_out + gate * lat_out

    out_ref[...] = jnp.tanh(final).astype(out_ref.dtype)


def _ggc_kernel_latent(text_ref, dep_ref, lat_ref, w_ref, b_ref, out_ref, **kw):
    _ggc_body(text_ref, dep_ref, lat_ref, w_ref, b_ref, out_ref, **kw)


def _ggc_kernel_dep_only(text_ref, dep_ref, w_ref, b_ref, out_ref, **kw):
    _ggc_body(text_ref, dep_ref, None, w_ref, b_ref, out_ref, **kw)


# ---------------------------------------------------------------------------
# Wrapper
# ---------------------------------------------------------------------------

def gated_graph_conv(text, dep_adj, weight, bias=None, latent_adj=None,
                     lambda_p=0.8, compute_dtype=jnp.bfloat16):
    """Forward pass of GatedGraphConvolution.

    text:       [B, N, Din]   f32
    dep_adj:    [B, N, N]     f32
    latent_adj: [B, N, N]     f32 or None
    weight:     [Din, Dout]   f32
    bias:       [Dout]        f32 or None
    returns:    [B, N, Dout]  f32
    """
    B, N, Din = text.shape
    assert weight.shape[0] == Din
    Dout = weight.shape[1]

    use_latent = (latent_adj is not None) and (float(lambda_p) < 1.0)
    use_bias = bias is not None
    n_adj = 2 if use_latent else 1

    cdt = jnp.dtype(compute_dtype)
    item = cdt.itemsize

    # Lane-dense feature dims (multiple of 128); stripped after the call.
    Din_p = _round_up(Din, 128)
    Dout_p = _round_up(Dout, 128)

    # --- pick how many graphs per grid step (amortize per-step overhead) ----
    per_batch_blocks = N * Din_p * item + n_adj * N * N * item + N * Dout_p * 4
    per_batch_total = 2 * per_batch_blocks + 8 * N * Dout_p * 4  # dbl-buffer + f32 temps
    vmem_budget = 40 << 20                       # headroom under v7x 64 MiB VMEM
    Bt = int(max(1, min(8, B, vmem_budget // max(per_batch_total, 1))))
    B_pad = _round_up(B, Bt)

    def pad_cast(x, tgt_shape, dtype):
        pads = [(0, t - s) for s, t in zip(x.shape, tgt_shape)]
        return jnp.pad(x, pads).astype(dtype)

    text_p = pad_cast(text, (B_pad, N, Din_p), cdt)
    dep_p = pad_cast(dep_adj, (B_pad, N, N), cdt)
    w_p = pad_cast(weight, (Din_p, Dout_p), cdt)
    b_p = (pad_cast(bias.reshape(1, Dout), (1, Dout_p), jnp.float32) if use_bias
           else jnp.zeros((1, Dout_p), jnp.float32))

    inputs = [text_p, dep_p]
    in_specs = [
        pl.BlockSpec((Bt, N, Din_p), lambda b: (b, 0, 0)),   # text
        pl.BlockSpec((Bt, N, N), lambda b: (b, 0, 0)),       # dep_adj
    ]
    if use_latent:
        lat_p = pad_cast(latent_adj, (B_pad, N, N), cdt)
        inputs.append(lat_p)
        in_specs.append(pl.BlockSpec((Bt, N, N), lambda b: (b, 0, 0)))
        kernel_fn = _ggc_kernel_latent
    else:
        kernel_fn = _ggc_kernel_dep_only
    inputs += [w_p, b_p]
    in_specs += [
        pl.BlockSpec((Din_p, Dout_p), lambda b: (0, 0)),     # weight (resident)
        pl.BlockSpec((1, Dout_p), lambda b: (0, 0)),         # bias   (resident)
    ]

    kernel = functools.partial(kernel_fn, lambda_p=float(lambda_p),
                               use_bias=use_bias)

    fixed_bytes = Din_p * Dout_p * item + Dout_p * 4
    vmem_limit = int(min(64 << 20,
                         max(4 << 20,
                             Bt * per_batch_total + 2 * fixed_bytes + (1 << 20))))

    flops = 2 * B_pad * N * Din_p * Dout_p + n_adj * 2 * B_pad * N * N * Dout_p
    transcendentals = B_pad * N * Dout_p * (2 if use_latent else 1)
    bytes_accessed = (text_p.size * item + dep_p.size * item
                      + (lat_p.size * item if use_latent else 0)
                      + w_p.size * item + b_p.size * 4
                      + B_pad * N * Dout_p * 4)

    out = pl.pallas_call(
        kernel,
        out_shape=jax.ShapeDtypeStruct((B_pad, N, Dout_p), jnp.float32),
        grid_spec=pltpu.PrefetchScalarGridSpec(
            num_scalar_prefetch=0,
            grid=(B_pad // Bt,),
            in_specs=in_specs,
            out_specs=pl.BlockSpec((Bt, N, Dout_p), lambda b: (b, 0, 0)),
        ),
        compiler_params=pltpu.CompilerParams(
            dimension_semantics=("parallel",),
            vmem_limit_bytes=vmem_limit),
        cost_estimate=pl.CostEstimate(
            flops=int(flops),
            transcendentals=int(transcendentals),
            bytes_accessed=int(bytes_accessed)),
    )(*inputs)

    return out[:B, :, :Dout]


# ---------------------------------------------------------------------------
# Pure-JAX reference (mirrors the PyTorch module)
# ---------------------------------------------------------------------------

def _reference(text, dep_adj, weight, bias, latent_adj, lambda_p):
    hidden = jnp.matmul(text, weight)
    denom = jnp.sum(dep_adj, axis=2, keepdims=True) + 1.0
    output = jnp.matmul(dep_adj, hidden) / denom
    dep_out = output + bias if bias is not None else output
    final = dep_out
    if latent_adj is not None and lambda_p < 1:
        denom_l = jnp.sum(latent_adj, axis=2, keepdims=True) + 1.0
        output = jnp.matmul(latent_adj, hidden) / denom_l
        lat_out = output + bias if bias is not None else output
        gate = (1.0 - lambda_p) * jax.nn.sigmoid(lat_out)
        final = (1.0 - gate) * dep_out + gate * lat_out
    return jnp.tanh(final)


if __name__ == "__main__":
    B, N, Din, Dout = 2, 16, 32, 32
    lambda_p = 0.8

    key = jax.random.PRNGKey(0)
    k_text, k_dep, k_lat, k_w, k_b = jax.random.split(key, 5)

    text = jax.random.normal(k_text, (B, N, Din), dtype=jnp.float32)
    dep_adj = (jax.random.uniform(k_dep, (B, N, N)) > 0.7).astype(jnp.float32)
    latent_adj = jax.random.uniform(k_lat, (B, N, N), dtype=jnp.float32)

    # Deterministic parameter init (the module leaves params uninitialized).
    weight = jax.random.normal(k_w, (Din, Dout), dtype=jnp.float32) * 0.1
    bias = jax.random.normal(k_b, (Dout,), dtype=jnp.float32) * 0.1

    # 1) exact path (f32 compute), with latent gating + bias
    out_f32 = gated_graph_conv(text, dep_adj, weight, bias,
                               latent_adj=latent_adj, lambda_p=lambda_p,
                               compute_dtype=jnp.float32)
    out_f32 = jax.block_until_ready(out_f32)
    ref = _reference(text, dep_adj, weight, bias, latent_adj, lambda_p)
    assert out_f32.shape == (B, N, Dout)
    assert jnp.allclose(out_f32, ref, atol=5e-5, rtol=5e-5), "f32 path mismatch"

    # 2) default fast path (bf16 MXU operands, f32 accumulation/elementwise)
    out_bf16 = gated_graph_conv(text, dep_adj, weight, bias,
                                latent_adj=latent_adj, lambda_p=lambda_p)
    out_bf16 = jax.block_until_ready(out_bf16)
    assert out_bf16.shape == (B, N, Dout)
    assert jnp.allclose(out_bf16, ref, atol=3e-2, rtol=3e-2), "bf16 path mismatch"

    # 3) dep-only variant (no latent input materialized), no bias, f32
    out_nl = gated_graph_conv(text, dep_adj, weight, None,
                              latent_adj=None, lambda_p=lambda_p,
                              compute_dtype=jnp.float32)
    out_nl = jax.block_until_ready(out_nl)
    ref_nl = _reference(text, dep_adj, weight, None, None, lambda_p)
    assert out_nl.shape == (B, N, Dout)
    assert jnp.allclose(out_nl, ref_nl, atol=5e-5, rtol=5e-5), "dep-only mismatch"

    print("KERNEL_OK")
</pallas_src>

<mosaic_0001>
module attributes {stable_mosaic.version = 11 : i64} {
  func.func @_ggc_kernel_latent(%arg0: i32, %arg1: memref<2x16x128xf32, #tpu.memory_space<vmem>>, %arg2: memref<2x16x16xf32, #tpu.memory_space<vmem>>, %arg3: memref<2x16x16xf32, #tpu.memory_space<vmem>>, %arg4: memref<128x128xf32, #tpu.memory_space<vmem>>, %arg5: memref<1x128xf32, #tpu.memory_space<vmem>>, %arg6: memref<2x16x128xf32, #tpu.memory_space<vmem>>) attributes {dimension_semantics = [#tpu.dimension_semantics<parallel>], iteration_bounds = array<i64: 1>, scalar_prefetch = 0 : i64, scratch_operands = 0 : i64, tpu.core_type = #tpu.core_type<tc>, window_params = [{transform_indices = @transform_0, window_bounds = array<i64: 2, 16, 128>}, {transform_indices = @transform_1, window_bounds = array<i64: 2, 16, 16>}, {transform_indices = @transform_2, window_bounds = array<i64: 2, 16, 16>}, {pipeline_mode = #tpu.pipeline_mode<synchronous>, transform_indices = @transform_3, window_bounds = array<i64: 128, 128>}, {pipeline_mode = #tpu.pipeline_mode<synchronous>, transform_indices = @transform_4, window_bounds = array<i64: 1, 128>}, {transform_indices = @transform_5, window_bounds = array<i64: 2, 16, 128>}]} {
    %c0 = arith.constant 0 : index
    %c0_0 = arith.constant 0 : index
    %c0_1 = arith.constant 0 : index
    %0 = vector.load %arg1[%c0, %c0_0, %c0_1] : memref<2x16x128xf32, #tpu.memory_space<vmem>>, vector<2x16x128xf32>
    %1 = vector.shape_cast %0 : vector<2x16x128xf32> to vector<32x128xf32>
    %c0_2 = arith.constant 0 : index
    %c0_3 = arith.constant 0 : index
    %2 = vector.load %arg4[%c0_2, %c0_3] : memref<128x128xf32, #tpu.memory_space<vmem>>, vector<128x128xf32>
    %cst = arith.constant dense<0.000000e+00> : vector<32x128xf32>
    %3 = tpu.matmul %1, %2, %cst {dimension_numbers = #tpu.dot_dimension_numbers<[1], [0], [0], [1], [0, 0, 1, 1], [], []>} : vector<32x128xf32>, vector<128x128xf32>, vector<32x128xf32> -> vector<32x128xf32>
    %4 = vector.shape_cast %3 : vector<32x128xf32> to vector<2x16x128xf32>
    %c0_4 = arith.constant 0 : index
    %c0_5 = arith.constant 0 : index
    %5 = vector.load %arg5[%c0_4, %c0_5] : memref<1x128xf32, #tpu.memory_space<vmem>>, vector<1x128xf32>
    %6 = vector.shape_cast %5 : vector<1x128xf32> to vector<128xf32>
    %c0_6 = arith.constant 0 : index
    %c0_7 = arith.constant 0 : index
    %c0_8 = arith.constant 0 : index
    %7 = vector.load %arg2[%c0_6, %c0_7, %c0_8] : memref<2x16x16xf32, #tpu.memory_space<vmem>>, vector<2x16x16xf32>
    %cst_9 = arith.constant dense<0.000000e+00> : vector<2x16xf32>
    %8 = vector.multi_reduction <add>, %7, %cst_9 [2] : vector<2x16x16xf32> to vector<2x16xf32>
    %9 = vector.shape_cast %8 : vector<2x16xf32> to vector<2x16x1xf32>
    %cst_10 = arith.constant 1.000000e+00 : f32
    %10 = vector.broadcast %cst_10 : f32 to vector<2x16x1xf32>
    %11 = arith.addf %9, %10 : vector<2x16x1xf32>
    %12 = tpu.reciprocal %11 : vector<2x16x1xf32> -> vector<2x16x1xf32>
    "tpu.trace_start"() <{level = 10 : i32, message = "bij,bjd->bid"}> : () -> ()
    %cst_11 = arith.constant dense<0.000000e+00> : vector<2x16x128xf32>
    %13 = tpu.matmul %7, %4, %cst_11 {dimension_numbers = #tpu.dot_dimension_numbers<[2], [1], [1], [2], [0, 0, 0, 1, 1, 2], [0], [0]>} : vector<2x16x16xf32>, vector<2x16x128xf32>, vector<2x16x128xf32> -> vector<2x16x128xf32>
    "tpu.trace_stop"() : () -> ()
    %14 = vector.broadcast %12 : vector<2x16x1xf32> to vector<2x16x128xf32>
    %15 = arith.mulf %13, %14 : vector<2x16x128xf32>
    %16 = vector.shape_cast %6 : vector<128xf32> to vector<1x1x128xf32>
    %17 = vector.broadcast %16 : vector<1x1x128xf32> to vector<2x16x128xf32>
    %18 = arith.addf %15, %17 : vector<2x16x128xf32>
    %c0_12 = arith.constant 0 : index
    %c0_13 = arith.constant 0 : index
    %c0_14 = arith.constant 0 : index
    %19 = vector.load %arg3[%c0_12, %c0_13, %c0_14] : memref<2x16x16xf32, #tpu.memory_space<vmem>>, vector<2x16x16xf32>
    %cst_15 = arith.constant dense<0.000000e+00> : vector<2x16xf32>
    %20 = vector.multi_reduction <add>, %19, %cst_15 [2] : vector<2x16x16xf32> to vector<2x16xf32>
    %21 = vector.shape_cast %20 : vector<2x16xf32> to vector<2x16x1xf32>
    %cst_16 = arith.constant 1.000000e+00 : f32
    %22 = vector.broadcast %cst_16 : f32 to vector<2x16x1xf32>
    %23 = arith.addf %21, %22 : vector<2x16x1xf32>
    %24 = tpu.reciprocal %23 : vector<2x16x1xf32> -> vector<2x16x1xf32>
    "tpu.trace_start"() <{level = 10 : i32, message = "bij,bjd->bid"}> : () -> ()
    %cst_17 = arith.constant dense<0.000000e+00> : vector<2x16x128xf32>
    %25 = tpu.matmul %19, %4, %cst_17 {dimension_numbers = #tpu.dot_dimension_numbers<[2], [1], [1], [2], [0, 0, 0, 1, 1, 2], [0], [0]>} : vector<2x16x16xf32>, vector<2x16x128xf32>, vector<2x16x128xf32> -> vector<2x16x128xf32>
    "tpu.trace_stop"() : () -> ()
    %26 = vector.broadcast %24 : vector<2x16x1xf32> to vector<2x16x128xf32>
    %27 = arith.mulf %25, %26 : vector<2x16x128xf32>
    %28 = vector.shape_cast %6 : vector<128xf32> to vector<1x1x128xf32>
    %29 = vector.broadcast %28 : vector<1x1x128xf32> to vector<2x16x128xf32>
    %30 = arith.addf %27, %29 : vector<2x16x128xf32>
    %31 = arith.negf %30 : vector<2x16x128xf32>
    %32 = math.exp %31 : vector<2x16x128xf32>
    %cst_18 = arith.constant 1.000000e+00 : f32
    %33 = vector.broadcast %cst_18 : f32 to vector<2x16x128xf32>
    %34 = arith.addf %33, %32 : vector<2x16x128xf32>
    %35 = arith.divf %33, %34 : vector<2x16x128xf32>
    %cst_19 = arith.constant 2.000000e-01 : f32
    %36 = vector.broadcast %cst_19 : f32 to vector<2x16x128xf32>
    %37 = arith.mulf %36, %35 : vector<2x16x128xf32>
    %cst_20 = arith.constant 1.000000e+00 : f32
    %38 = vector.broadcast %cst_20 : f32 to vector<2x16x128xf32>
    %39 = arith.subf %38, %37 : vector<2x16x128xf32>
    %40 = arith.mulf %39, %18 : vector<2x16x128xf32>
    %41 = arith.mulf %37, %30 : vector<2x16x128xf32>
    %42 = arith.addf %40, %41 : vector<2x16x128xf32>
    %43 = math.tanh %42 : vector<2x16x128xf32>
    %c0_21 = arith.constant 0 : index
    %c0_22 = arith.constant 0 : index
    %c0_23 = arith.constant 0 : index
    %44 = vector.load %arg6[%c0_21, %c0_22, %c0_23] : memref<2x16x128xf32, #tpu.memory_space<vmem>>, vector<2x16x128xf32>
    tpu.vector_store %arg6[%c0_21, %c0_22, %c0_23], %43 {strides = array<i32>} : memref<2x16x128xf32, #tpu.memory_space<vmem>>, vector<2x16x128xf32>,
    return
  }
  func.func @transform_0(%arg0: i32) -> (i32, i32, i32) {
    %c0_i32 = arith.constant 0 : i32
    %c0_i32_0 = arith.constant 0 : i32
    %c0_i32_1 = arith.constant 0 : i32
    return %arg0, %c0_i32, %c0_i32_0 : i32, i32, i32
  }
  func.func @transform_1(%arg0: i32) -> (i32, i32, i32) {
    %c0_i32 = arith.constant 0 : i32
    %c0_i32_0 = arith.constant 0 : i32
    %c0_i32_1 = arith.constant 0 : i32
    return %arg0, %c0_i32, %c0_i32_0 : i32, i32, i32
  }
  func.func @transform_2(%arg0: i32) -> (i32, i32, i32) {
    %c0_i32 = arith.constant 0 : i32
    %c0_i32_0 = arith.constant 0 : i32
    %c0_i32_1 = arith.constant 0 : i32
    return %arg0, %c0_i32, %c0_i32_0 : i32, i32, i32
  }
  func.func @transform_3(%arg0: i32) -> (i32, i32) {
    %c0_i32 = arith.constant 0 : i32
    %c0_i32_0 = arith.constant 0 : i32
    %c0_i32_1 = arith.constant 0 : i32
    return %c0_i32, %c0_i32_0 : i32, i32
  }
  func.func @transform_4(%arg0: i32) -> (i32, i32) {
    %c0_i32 = arith.constant 0 : i32
    %c0_i32_0 = arith.constant 0 : i32
    %c0_i32_1 = arith.constant 0 : i32
    return %c0_i32, %c0_i32_0 : i32, i32
  }
  func.func @transform_5(%arg0: i32) -> (i32, i32, i32) {
    %c0_i32 = arith.constant 0 : i32
    %c0_i32_0 = arith.constant 0 : i32
    %c0_i32_1 = arith.constant 0 : i32
    return %arg0, %c0_i32, %c0_i32_0 : i32, i32, i32
  }
}

</mosaic_0001>

<llo_original>
// kernel: tpu_custom_call.1
$region0: #{tpu_custom_call.1}
  #allocation0 [shape = 'u32[]', space=smem, size = 0x4, offset = 0x4, fixed_abs, tag = 'smem constant byte address 0x4 - core index']
  #allocation1 [shape = 'u32[144,128]{1,0:T(1,128)}', space=vmem, size = 0x12000, scoped, tag = 'internal scratch']
  %s0 = inlined_call_operand.hbm [shape: f32[2,16,128], index: 0, kind: input, shape index: {}]
  %s1 = inlined_call_operand.hbm [shape: f32[2,16,16], index: 1, kind: input, shape index: {}]
  %s2 = inlined_call_operand.hbm [shape: f32[2,16,16], index: 2, kind: input, shape index: {}]
  %s3 = inlined_call_operand.hbm [shape: f32[128,128], index: 3, kind: input, shape index: {}]
  %s4 = inlined_call_operand.vmem [shape: f32[1,128], index: 4, kind: input, shape index: {}]
  %s5 = inlined_call_operand.hbm [shape: f32[2,16,128], index: 5, kind: output, shape index: {}]
  %s6 = sld [smem:[#allocation0]]
  $region46: #{tpu_custom_call.1} parent=0
    _
  %s8 = ssub.s32 1, %s6
  %s9 = scalar_select 0, %s8, %s6
  $region1: #{tpu_custom_call.1} parent=0
    #allocation2 [shape = 'u8[16384]{0}', space=vmem, size = 0x4000, scoped, tag = 'input window, operand 0, single buffered']
    #allocation3 [shape = 's32[1]{0}', space=sflag, size = 0x4, scoped, tag = 'scoped memory for tpu_custom_call.1']
    #allocation4 [shape = 's32[1]{0}', space=sflag, size = 0x4, scoped, tag = 'scoped memory for tpu_custom_call.1']
    #allocation5 [shape = 'u8[16384]{0}', space=vmem, size = 0x4000, scoped, tag = 'input window, operand 1, single buffered']
    #allocation6 [shape = 's32[1]{0}', space=sflag, size = 0x4, scoped, tag = 'scoped memory for tpu_custom_call.1']
    #allocation7 [shape = 'u8[16384]{0}', space=vmem, size = 0x4000, scoped, tag = 'input window, operand 2, single buffered']
    #allocation8 [shape = 'u8[65536]{0}', space=vmem, size = 0x10000, scoped, tag = 'input window, operand 3, single buffered']
    #allocation9 [shape = 's32[1]{0}', space=sflag, size = 0x4, scoped, tag = 'scoped memory for tpu_custom_call.1']
    #allocation10 [shape = 'u8[16384]{0}', space=vmem, size = 0x4000, scoped, tag = 'output window, operand 0, single buffered']
    %10 = vsyncpa [#allocation3], 0
    %11 = vsyncpa [#allocation6], 0
    %12 = vsyncpa [#allocation9], 0
    %13 = vsyncpa [#allocation4], 0
    // Predicated region
    $region2: #{tpu_custom_call.1} parent=1 // pred_check
      _
    $region3: #{tpu_custom_call.1} parent=1 // pred_check_branch
      %15 = sbr.rel (0) target = $region5
    $region4: #{tpu_custom_call.1} parent=1 // pred_region
      %s17 = ssub.s32 512, 512
      %18 = vsyncadd [#allocation3], %s17
      %s19 = sshll.u32 [#allocation2], 4
      %s20 = int_to_ptr.vmem [resolvable:$true] %s19
      %25 = dma.hbm_to_vmem [thread:$0]  %s0, 512, %s20, [#allocation3], 128, 128, 8
    $region5: #{tpu_custom_call.1} parent=1 // pred_fallthru
      _
    // Predicated region
    $region6: #{tpu_custom_call.1} parent=1 // pred_check
      _
    $region7: #{tpu_custom_call.1} parent=1 // pred_check_branch
      %27 = sbr.rel (0) target = $region9
    $region8: #{tpu_custom_call.1} parent=1 // pred_region
      %s29 = ssub.s32 512, 512
      %30 = vsyncadd [#allocation6], %s29
      %s31 = sshll.u32 [#allocation5], 4
      %s32 = int_to_ptr.vmem [resolvable:$true] %s31
      %37 = dma.hbm_to_vmem [thread:$0]  %s1, 512, %s32, [#allocation6], 128, 128, 8
    $region9: #{tpu_custom_call.1} parent=1 // pred_fallthru
      _
    // Predicated region
    $region10: #{tpu_custom_call.1} parent=1 // pred_check
      _
    $region11: #{tpu_custom_call.1} parent=1 // pred_check_branch
      %39 = sbr.rel (0) target = $region13
    $region12: #{tpu_custom_call.1} parent=1 // pred_region
      %s41 = ssub.s32 512, 512
      %42 = vsyncadd [#allocation6], %s41
      %s43 = sshll.u32 [#allocation7], 4
      %s44 = int_to_ptr.vmem [resolvable:$true] %s43
      %49 = dma.hbm_to_vmem [thread:$0]  %s2, 512, %s44, [#allocation6], 128, 128, 8
    $region13: #{tpu_custom_call.1} parent=1 // pred_fallthru
      _
    // Predicated region
    $region14: #{tpu_custom_call.1} parent=1 // pred_check
      _
    $region15: #{tpu_custom_call.1} parent=1 // pred_check_branch
      %51 = sbr.rel (0) target = $region17
    $region16: #{tpu_custom_call.1} parent=1 // pred_region
      %s53 = ssub.s32 2048, 2048
      %54 = vsyncadd [#allocation9], %s53
      %s55 = sshll.u32 [#allocation8], 4
      %s56 = int_to_ptr.vmem [resolvable:$true] %s55
      %61 = dma.hbm_to_vmem [thread:$0]  %s3, 2048, %s56, [#allocation9], 128, 128, 8
    $region17: #{tpu_custom_call.1} parent=1 // pred_fallthru
      _
    // Predicated region
    $region18: #{tpu_custom_call.1} parent=1 // pred_check
      _
    $region19: #{tpu_custom_call.1} parent=1 // pred_check_branch
      %63 = sbr.rel (0) target = $region21
    $region20: #{tpu_custom_call.1} parent=1 // pred_region
      _
    $region21: #{tpu_custom_call.1} parent=1 // pred_fallthru
      _
    // Predicated region
    $region22: #{tpu_custom_call.1} parent=1 // pred_check
      _
    $region23: #{tpu_custom_call.1} parent=1 // pred_check_branch
      %65 = sbr.rel (0) target = $region25
    $region24: #{tpu_custom_call.1} parent=1 // pred_region
      %66 = dma.done [#allocation3], 512
    $region25: #{tpu_custom_call.1} parent=1 // pred_fallthru
      _
    // Predicated region
    $region26: #{tpu_custom_call.1} parent=1 // pred_check
      _
    $region27: #{tpu_custom_call.1} parent=1 // pred_check_branch
      %68 = sbr.rel (0) target = $region29
    $region28: #{tpu_custom_call.1} parent=1 // pred_region
      %69 = dma.done [#allocation6], 512
    $region29: #{tpu_custom_call.1} parent=1 // pred_fallthru
      _
    // Predicated region
    $region30: #{tpu_custom_call.1} parent=1 // pred_check
      _
    $region31: #{tpu_custom_call.1} parent=1 // pred_check_branch
      %71 = sbr.rel (0) target = $region33
    $region32: #{tpu_custom_call.1} parent=1 // pred_region
      %72 = dma.done [#allocation6], 512
    $region33: #{tpu_custom_call.1} parent=1 // pred_fallthru
      _
    // Predicated region
    $region34: #{tpu_custom_call.1} parent=1 // pred_check
      _
    $region35: #{tpu_custom_call.1} parent=1 // pred_check_branch
      %74 = sbr.rel (0) target = $region37
    $region36: #{tpu_custom_call.1} parent=1 // pred_region
      %75 = dma.done [#allocation9], 2048
    $region37: #{tpu_custom_call.1} parent=1 // pred_fallthru
      _
    %v76 = vld [vmem:[#allocation2] sm:$0xff]
    %v77 = vld [vmem:[#allocation2 + $0x8] sm:$0xff]
    %v78 = vld [vmem:[#allocation2 + $0x10] sm:$0xff]
    %v79 = vld [vmem:[#allocation2 + $0x18] sm:$0xff]
    %v80 = vld [vmem:[#allocation8] sm:$0xff]
    %v81 = vld [vmem:[#allocation8 + $0x8] sm:$0xff]
    %v82 = vld [vmem:[#allocation8 + $0x10] sm:$0xff]
    %v83 = vld [vmem:[#allocation8 + $0x18] sm:$0xff]
    %v84 = vld [vmem:[#allocation8 + $0x20] sm:$0xff]
    %v85 = vld [vmem:[#allocation8 + $0x28] sm:$0xff]
    %v86 = vld [vmem:[#allocation8 + $0x30] sm:$0xff]
    %v87 = vld [vmem:[#allocation8 + $0x38] sm:$0xff]
    %v88 = vld [vmem:[#allocation8 + $0x40] sm:$0xff]
    %v89 = vld [vmem:[#allocation8 + $0x48] sm:$0xff]
    %v90 = vld [vmem:[#allocation8 + $0x50] sm:$0xff]
    %v91 = vld [vmem:[#allocation8 + $0x58] sm:$0xff]
    %v92 = vld [vmem:[#allocation8 + $0x60] sm:$0xff]
    %v93 = vld [vmem:[#allocation8 + $0x68] sm:$0xff]
    %v94 = vld [vmem:[#allocation8 + $0x70] sm:$0xff]
    %v95 = vld [vmem:[#allocation8 + $0x78] sm:$0xff]
    %96 = vmatprep.subr.mxu0 0.0
    %97 = vmatpush1.msra.mxu0 %v80
    %98 = vmatprep.subr.mxu0 0.0
    %99 = vmatpush1.msra.mxu0 %v81
    %100 = vmatprep.subr.mxu0 0.0
    %101 = vmatpush1.msra.mxu0 %v82
    %102 = vmatprep.subr.mxu0 0.0
    %103 = vmatpush1.msra.mxu0 %v83
    %104 = vmatprep.subr.mxu0 0.0
    %105 = vmatpush1.msra.mxu0 %v84
    %106 = vmatprep.subr.mxu0 0.0
    %107 = vmatpush1.msra.mxu0 %v85
    %108 = vmatprep.subr.mxu0 0.0
    %109 = vmatpush1.msra.mxu0 %v86
    %110 = vmatprep.subr.mxu0 0.0
    %111 = vmatpush1.msra.mxu0 %v87
    %112 = vmatprep.subr.mxu0 0.0
    %113 = vmatpush1.msra.mxu0 %v88
    %114 = vmatprep.subr.mxu0 0.0
    %115 = vmatpush1.msra.mxu0 %v89
    %116 = vmatprep.subr.mxu0 0.0
    %117 = vmatpush1.msra.mxu0 %v90
    %118 = vmatprep.subr.mxu0 0.0
    %119 = vmatpush1.msra.mxu0 %v91
    %120 = vmatprep.subr.mxu0 0.0
    %121 = vmatpush1.msra.mxu0 %v92
    %122 = vmatprep.subr.mxu0 0.0
    %123 = vmatpush1.msra.mxu0 %v93
    %124 = vmatprep.subr.mxu0 0.0
    %125 = vmatpush1.msra.mxu0 %v94
    %126 = vmatprep.subr.mxu0 0.0
    %127 = vmatpush1.msra.mxu0 %v95
    %128 = vmatprep.subr.mxu0 0.0
    %129 = vmatpush1.msra.mxu0 0.0
    %130 = vmatprep.subr.mxu0 0.0
    %131 = vmatpush1.msra.mxu0 0.0
    %132 = vmatprep.subr.mxu0 0.0
    %133 = vmatpush1.msra.mxu0 0.0
    %134 = vmatprep.subr.mxu0 0.0
    %135 = vmatpush1.msra.mxu0 0.0
    %136 = vmatprep.subr.mxu0 0.0
    %137 = vmatpush1.msra.mxu0 0.0
    %138 = vmatprep.subr.mxu0 0.0
    %139 = vmatpush1.msra.mxu0 0.0
    %140 = vmatprep.subr.mxu0 0.0
    %141 = vmatpush1.msra.mxu0 0.0
    %142 = vmatprep.subr.mxu0 0.0
    %143 = vmatpush1.msra.mxu0 0.0
    %144 = vmatprep.subr.mxu0 0.0
    %145 = vmatpush1.msra.mxu0 0.0
    %146 = vmatprep.subr.mxu0 0.0
    %147 = vmatpush1.msra.mxu0 0.0
    %148 = vmatprep.subr.mxu0 0.0
    %149 = vmatpush1.msra.mxu0 0.0
    %150 = vmatprep.subr.mxu0 0.0
    %151 = vmatpush1.msra.mxu0 0.0
    %152 = vmatprep.subr.mxu0 0.0
    %153 = vmatpush1.msra.mxu0 0.0
    %154 = vmatprep.subr.mxu0 0.0
    %155 = vmatpush1.msra.mxu0 0.0
    %156 = vmatprep.subr.mxu0 0.0
    %157 = vmatpush1.msra.mxu0 0.0
    %158 = vmatprep.subr.mxu0 0.0
    %159 = vmatpush1.msra.mxu0 0.0
    %160 = vmatprep.mubr.f32.mxu0 0.0
    %161 = vmatmul.mubr.f32.gmra.mrb[0].mxu0 %v76
    %v162 = vpop.f32.mrb[0].mxu0
    %v163 = vadd.f32 0.0, %v162
    %v164 = vpop.f32.mrb[0].mxu0
    %165 = vmatprep.mubr.f32.mxu0 0.0
    %166 = vmatmul.mubr.f32.gmra.mrb[0].mxu0 %v77
    %v167 = vpop.f32.mrb[0].mxu0
    %v168 = vadd.f32 0.0, %v167
    %v169 = vpop.f32.mrb[0].mxu0
    %170 = vmatprep.mubr.f32.mxu0 0.0
    %171 = vmatmul.mubr.f32.gmra.mrb[0].mxu0 %v78
    %v172 = vpop.f32.mrb[0].mxu0
    %v173 = vadd.f32 0.0, %v172
    %v174 = vpop.f32.mrb[0].mxu0
    %175 = vmatprep.mubr.f32.mxu0 0.0
    %176 = vmatmul.mubr.f32.gmra.mrb[0].mxu0 %v79
    %v177 = vpop.f32.mrb[0].mxu0
    %v178 = vadd.f32 0.0, %v177
    %v179 = vpop.f32.mrb[0].mxu0
    %180 = vdwg.mxu0
    %v181 = vld [vmem:[%s4] sm:$0x1]
    %v182 = vld [vmem:[#allocation5] sm:$0xff]
    %v183 = vld [vmem:[#allocation5 + $0x8] sm:$0xff]
    %v184 = vld [vmem:[#allocation5 + $0x10] sm:$0xff]
    %v185 = vld [vmem:[#allocation5 + $0x18] sm:$0xff]
    %vm186 = vcmask 130048
    %v187 = vsel %vm186, %v182, 0.0
    %188 = vadd.xlane.f32.xlu0 %v187
    %v189 = vpop.xlane.xlu0 %188
    %v190 = vsel %vm186, %v183, 0.0
    %191 = vadd.xlane.f32.xlu0 %v190
    %v192 = vpop.xlane.xlu0 %191
    %v193 = vsel %vm186, %v184, 0.0
    %194 = vadd.xlane.f32.xlu0 %v193
    %v195 = vpop.xlane.xlu0 %194
    %v196 = vsel %vm186, %v185, 0.0
    %197 = vadd.xlane.f32.xlu0 %v196
    %v198 = vpop.xlane.xlu0 %197
    %v199 = vadd.f32 %v189, 1.0
    %v200 = vadd.f32 %v192, 1.0
    %v201 = vadd.f32 %v195, 1.0
    %v202 = vadd.f32 %v198, 1.0
    %v203 = vrcp.pop %v199
    %v204 = vrcp.pop %v200
    %v205 = vrcp.pop %v201
    %v206 = vrcp.pop %v202
    %v208 = vsel %vm186, %v182, 0
    %v211 = vsel %vm186, %v183, 0
    %213 = vmatprep.subr.mxu0 0.0
    %214 = vmatpush1.msra.mxu0 %v163
    %215 = vmatprep.subr.mxu0 0.0
    %216 = vmatpush1.msra.mxu0 %v168
    %217 = vmatprep.subr.mxu0 0.0
    %218 = vmatpush1.msra.mxu0 0.0
    %219 = vmatprep.subr.mxu0 0.0
    %220 = vmatpush1.msra.mxu0 0.0
    %221 = vmatprep.subr.mxu0 0.0
    %222 = vmatpush1.msra.mxu0 0.0
    %223 = vmatprep.subr.mxu0 0.0
    %224 = vmatpush1.msra.mxu0 0.0
    %225 = vmatprep.subr.mxu0 0.0
    %226 = vmatpush1.msra.mxu0 0.0
    %227 = vmatprep.subr.mxu0 0.0
    %228 = vmatpush1.msra.mxu0 0.0
    %229 = vmatprep.subr.mxu0 0.0
    %230 = vmatpush1.msra.mxu0 0.0
    %231 = vmatprep.subr.mxu0 0.0
    %232 = vmatpush1.msra.mxu0 0.0
    %233 = vmatprep.subr.mxu0 0.0
    %234 = vmatpush1.msra.mxu0 0.0
    %235 = vmatprep.subr.mxu0 0.0
    %236 = vmatpush1.msra.mxu0 0.0
    %237 = vmatprep.subr.mxu0 0.0
    %238 = vmatpush1.msra.mxu0 0.0
    %239 = vmatprep.subr.mxu0 0.0
    %240 = vmatpush1.msra.mxu0 0.0
    %241 = vmatprep.subr.mxu0 0.0
    %242 = vmatpush1.msra.mxu0 0.0
    %243 = vmatprep.subr.mxu0 0.0
    %244 = vmatpush1.msra.mxu0 0.0
    %245 = vmatprep.subr.mxu0 0.0
    %246 = vmatpush1.msra.mxu0 0.0
    %247 = vmatprep.subr.mxu0 0.0
    %248 = vmatpush1.msra.mxu0 0.0
    %249 = vmatprep.subr.mxu0 0.0
    %250 = vmatpush1.msra.mxu0 0.0
    %251 = vmatprep.subr.mxu0 0.0
    %252 = vmatpush1.msra.mxu0 0.0
    %253 = vmatprep.subr.mxu0 0.0
    %254 = vmatpush1.msra.mxu0 0.0
    %255 = vmatprep.subr.mxu0 0.0
    %256 = vmatpush1.msra.mxu0 0.0
    %257 = vmatprep.subr.mxu0 0.0
    %258 = vmatpush1.msra.mxu0 0.0
    %259 = vmatprep.subr.mxu0 0.0
    %260 = vmatpush1.msra.mxu0 0.0
    %261 = vmatprep.subr.mxu0 0.0
    %262 = vmatpush1.msra.mxu0 0.0
    %263 = vmatprep.subr.mxu0 0.0
    %264 = vmatpush1.msra.mxu0 0.0
    %265 = vmatprep.subr.mxu0 0.0
    %266 = vmatpush1.msra.mxu0 0.0
    %267 = vmatprep.subr.mxu0 0.0
    %268 = vmatpush1.msra.mxu0 0.0
    %269 = vmatprep.subr.mxu0 0.0
    %270 = vmatpush1.msra.mxu0 0.0
    %271 = vmatprep.subr.mxu0 0.0
    %272 = vmatpush1.msra.mxu0 0.0
    %273 = vmatprep.subr.mxu0 0.0
    %274 = vmatpush1.msra.mxu0 0.0
    %275 = vmatprep.subr.mxu0 0.0
    %276 = vmatpush1.msra.mxu0 0.0
    %277 = vmatprep.mubr.f32.mxu0 0.0
    %278 = vmatmul.mubr.f32.gmra.mrb[0].mxu0 %v208
    %v279 = vpop.f32.mrb[0].mxu0
    %v280 = vadd.f32 0.0, %v279
    %v281 = vpop.f32.mrb[0].mxu0
    %282 = vmatprep.mubr.f32.mxu0 0.0
    %283 = vmatmul.mubr.f32.gmra.mrb[0].mxu0 %v211
    %v284 = vpop.f32.mrb[0].mxu0
    %v285 = vadd.f32 0.0, %v284
    %v286 = vpop.f32.mrb[0].mxu0
    %287 = vdwg.mxu0
    %v289 = vsel %vm186, %v184, 0
    %v292 = vsel %vm186, %v185, 0
    %294 = vmatprep.subr.mxu0 0.0
    %295 = vmatpush1.msra.mxu0 %v173
    %296 = vmatprep.subr.mxu0 0.0
    %297 = vmatpush1.msra.mxu0 %v178
    %298 = vmatprep.subr.mxu0 0.0
    %299 = vmatpush1.msra.mxu0 0.0
    %300 = vmatprep.subr.mxu0 0.0
    %301 = vmatpush1.msra.mxu0 0.0
    %302 = vmatprep.subr.mxu0 0.0
    %303 = vmatpush1.msra.mxu0 0.0
    %304 = vmatprep.subr.mxu0 0.0
    %305 = vmatpush1.msra.mxu0 0.0
    %306 = vmatprep.subr.mxu0 0.0
    %307 = vmatpush1.msra.mxu0 0.0
    %308 = vmatprep.subr.mxu0 0.0
    %309 = vmatpush1.msra.mxu0 0.0
    %310 = vmatprep.subr.mxu0 0.0
    %311 = vmatpush1.msra.mxu0 0.0
    %312 = vmatprep.subr.mxu0 0.0
    %313 = vmatpush1.msra.mxu0 0.0
    %314 = vmatprep.subr.mxu0 0.0
    %315 = vmatpush1.msra.mxu0 0.0
    %316 = vmatprep.subr.mxu0 0.0
    %317 = vmatpush1.msra.mxu0 0.0
    %318 = vmatprep.subr.mxu0 0.0
    %319 = vmatpush1.msra.mxu0 0.0
    %320 = vmatprep.subr.mxu0 0.0
    %321 = vmatpush1.msra.mxu0 0.0
    %322 = vmatprep.subr.mxu0 0.0
    %323 = vmatpush1.msra.mxu0 0.0
    %324 = vmatprep.subr.mxu0 0.0
    %325 = vmatpush1.msra.mxu0 0.0
    %326 = vmatprep.subr.mxu0 0.0
    %327 = vmatpush1.msra.mxu0 0.0
    %328 = vmatprep.subr.mxu0 0.0
    %329 = vmatpush1.msra.mxu0 0.0
    %330 = vmatprep.subr.mxu0 0.0
    %331 = vmatpush1.msra.mxu0 0.0
    %332 = vmatprep.subr.mxu0 0.0
    %333 = vmatpush1.msra.mxu0 0.0
    %334 = vmatprep.subr.mxu0 0.0
    %335 = vmatpush1.msra.mxu0 0.0
    %336 = vmatprep.subr.mxu0 0.0
    %337 = vmatpush1.msra.mxu0 0.0
    %338 = vmatprep.subr.mxu0 0.0
    %339 = vmatpush1.msra.mxu0 0.0
    %340 = vmatprep.subr.mxu0 0.0
    %341 = vmatpush1.msra.mxu0 0.0
    %342 = vmatprep.subr.mxu0 0.0
    %343 = vmatpush1.msra.mxu0 0.0
    %344 = vmatprep.subr.mxu0 0.0
    %345 = vmatpush1.msra.mxu0 0.0
    %346 = vmatprep.subr.mxu0 0.0
    %347 = vmatpush1.msra.mxu0 0.0
    %348 = vmatprep.subr.mxu0 0.0
    %349 = vmatpush1.msra.mxu0 0.0
    %350 = vmatprep.subr.mxu0 0.0
    %351 = vmatpush1.msra.mxu0 0.0
    %352 = vmatprep.subr.mxu0 0.0
    %353 = vmatpush1.msra.mxu0 0.0
    %354 = vmatprep.subr.mxu0 0.0
    %355 = vmatpush1.msra.mxu0 0.0
    %356 = vmatprep.subr.mxu0 0.0
    %357 = vmatpush1.msra.mxu0 0.0
    %358 = vmatprep.mubr.f32.mxu0 0.0
    %359 = vmatmul.mubr.f32.gmra.mrb[0].mxu0 %v289
    %v360 = vpop.f32.mrb[0].mxu0
    %v361 = vadd.f32 0.0, %v360
    %v362 = vpop.f32.mrb[0].mxu0
    %363 = vmatprep.mubr.f32.mxu0 0.0
    %364 = vmatmul.mubr.f32.gmra.mrb[0].mxu0 %v292
    %v365 = vpop.f32.mrb[0].mxu0
    %v366 = vadd.f32 0.0, %v365
    %v367 = vpop.f32.mrb[0].mxu0
    %368 = vdwg.mxu0
    %v369 = vmul.f32 %v280, %v203
    %v370 = vmul.f32 %v285, %v204
    %v371 = vmul.f32 %v361, %v205
    %v372 = vmul.f32 %v366, %v206
    %v374 = vlaneseq
    %v375 = vshrl.u32 %v374, 7
    %v376 = vsub.s32 0, %v375
    %v377 = vrot.slane %v181, %v376
    %v379 = vadd.f32 %v369, %v377
    %v380 = vadd.f32 %v370, %v377
    %v381 = vadd.f32 %v371, %v377
    %v382 = vadd.f32 %v372, %v377
    %v383 = vld [vmem:[#allocation7] sm:$0xff]
    %v384 = vld [vmem:[#allocation7 + $0x8] sm:$0xff]
    %v385 = vld [vmem:[#allocation7 + $0x10] sm:$0xff]
    %v386 = vld [vmem:[#allocation7 + $0x18] sm:$0xff]
    %v387 = vsel %vm186, %v383, 0.0
    %388 = vadd.xlane.f32.xlu0 %v387
    %v389 = vpop.xlane.xlu0 %388
    %v390 = vsel %vm186, %v384, 0.0
    %391 = vadd.xlane.f32.xlu0 %v390
    %v392 = vpop.xlane.xlu0 %391
    %v393 = vsel %vm186, %v385, 0.0
    %394 = vadd.xlane.f32.xlu0 %v393
    %v395 = vpop.xlane.xlu0 %394
    %v396 = vsel %vm186, %v386, 0.0
    %397 = vadd.xlane.f32.xlu0 %v396
    %v398 = vpop.xlane.xlu0 %397
    %v399 = vadd.f32 %v389, 1.0
    %v400 = vadd.f32 %v392, 1.0
    %v401 = vadd.f32 %v395, 1.0
    %v402 = vadd.f32 %v398, 1.0
    %v403 = vrcp.pop %v399
    %v404 = vrcp.pop %v400
    %v405 = vrcp.pop %v401
    %v406 = vrcp.pop %v402
    %v408 = vsel %vm186, %v383, 0
    %v411 = vsel %vm186, %v384, 0
    %413 = vmatprep.subr.mxu0 0.0
    %414 = vmatpush1.msra.mxu0 %v163
    %415 = vmatprep.subr.mxu0 0.0
    %416 = vmatpush1.msra.mxu0 %v168
    %417 = vmatprep.subr.mxu0 0.0
    %418 = vmatpush1.msra.mxu0 0.0
    %419 = vmatprep.subr.mxu0 0.0
    %420 = vmatpush1.msra.mxu0 0.0
    %421 = vmatprep.subr.mxu0 0.0
    %422 = vmatpush1.msra.mxu0 0.0
    %423 = vmatprep.subr.mxu0 0.0
    %424 = vmatpush1.msra.mxu0 0.0
    %425 = vmatprep.subr.mxu0 0.0
    %426 = vmatpush1.msra.mxu0 0.0
    %427 = vmatprep.subr.mxu0 0.0
    %428 = vmatpush1.msra.mxu0 0.0
    %429 = vmatprep.subr.mxu0 0.0
    %430 = vmatpush1.msra.mxu0 0.0
    %431 = vmatprep.subr.mxu0 0.0
    %432 = vmatpush1.msra.mxu0 0.0
    %433 = vmatprep.subr.mxu0 0.0
    %434 = vmatpush1.msra.mxu0 0.0
    %435 = vmatprep.subr.mxu0 0.0
    %436 = vmatpush1.msra.mxu0 0.0
    %437 = vmatprep.subr.mxu0 0.0
    %438 = vmatpush1.msra.mxu0 0.0
    %439 = vmatprep.subr.mxu0 0.0
    %440 = vmatpush1.msra.mxu0 0.0
    %441 = vmatprep.subr.mxu0 0.0
    %442 = vmatpush1.msra.mxu0 0.0
    %443 = vmatprep.subr.mxu0 0.0
    %444 = vmatpush1.msra.mxu0 0.0
    %445 = vmatprep.subr.mxu0 0.0
    %446 = vmatpush1.msra.mxu0 0.0
    %447 = vmatprep.subr.mxu0 0.0
    %448 = vmatpush1.msra.mxu0 0.0
    %449 = vmatprep.subr.mxu0 0.0
    %450 = vmatpush1.msra.mxu0 0.0
    %451 = vmatprep.subr.mxu0 0.0
    %452 = vmatpush1.msra.mxu0 0.0
    %453 = vmatprep.subr.mxu0 0.0
    %454 = vmatpush1.msra.mxu0 0.0
    %455 = vmatprep.subr.mxu0 0.0
    %456 = vmatpush1.msra.mxu0 0.0
    %457 = vmatprep.subr.mxu0 0.0
    %458 = vmatpush1.msra.mxu0 0.0
    %459 = vmatprep.subr.mxu0 0.0
    %460 = vmatpush1.msra.mxu0 0.0
    %461 = vmatprep.subr.mxu0 0.0
    %462 = vmatpush1.msra.mxu0 0.0
    %463 = vmatprep.subr.mxu0 0.0
    %464 = vmatpush1.msra.mxu0 0.0
    %465 = vmatprep.subr.mxu0 0.0
    %466 = vmatpush1.msra.mxu0 0.0
    %467 = vmatprep.subr.mxu0 0.0
    %468 = vmatpush1.msra.mxu0 0.0
    %469 = vmatprep.subr.mxu0 0.0
    %470 = vmatpush1.msra.mxu0 0.0
    %471 = vmatprep.subr.mxu0 0.0
    %472 = vmatpush1.msra.mxu0 0.0
    %473 = vmatprep.subr.mxu0 0.0
    %474 = vmatpush1.msra.mxu0 0.0
    %475 = vmatprep.subr.mxu0 0.0
    %476 = vmatpush1.msra.mxu0 0.0
    %477 = vmatprep.mubr.f32.mxu0 0.0
    %478 = vmatmul.mubr.f32.gmra.mrb[0].mxu0 %v408
    %v479 = vpop.f32.mrb[0].mxu0
    %v480 = vadd.f32 0.0, %v479
    %v481 = vpop.f32.mrb[0].mxu0
    %482 = vmatprep.mubr.f32.mxu0 0.0
    %483 = vmatmul.mubr.f32.gmra.mrb[0].mxu0 %v411
    %v484 = vpop.f32.mrb[0].mxu0
    %v485 = vadd.f32 0.0, %v484
    %v486 = vpop.f32.mrb[0].mxu0
    %487 = vdwg.mxu0
    %v489 = vsel %vm186, %v385, 0
    %v492 = vsel %vm186, %v386, 0
    %494 = vmatprep.subr.mxu0 0.0
    %495 = vmatpush1.msra.mxu0 %v173
    %496 = vmatprep.subr.mxu0 0.0
    %497 = vmatpush1.msra.mxu0 %v178
    %498 = vmatprep.subr.mxu0 0.0
    %499 = vmatpush1.msra.mxu0 0.0
    %500 = vmatprep.subr.mxu0 0.0
    %501 = vmatpush1.msra.mxu0 0.0
    %502 = vmatprep.subr.mxu0 0.0
    %503 = vmatpush1.msra.mxu0 0.0
    %504 = vmatprep.subr.mxu0 0.0
    %505 = vmatpush1.msra.mxu0 0.0
    %506 = vmatprep.subr.mxu0 0.0
    %507 = vmatpush1.msra.mxu0 0.0
    %508 = vmatprep.subr.mxu0 0.0
    %509 = vmatpush1.msra.mxu0 0.0
    %510 = vmatprep.subr.mxu0 0.0
    %511 = vmatpush1.msra.mxu0 0.0
    %512 = vmatprep.subr.mxu0 0.0
    %513 = vmatpush1.msra.mxu0 0.0
    %514 = vmatprep.subr.mxu0 0.0
    %515 = vmatpush1.msra.mxu0 0.0
    %516 = vmatprep.subr.mxu0 0.0
    %517 = vmatpush1.msra.mxu0 0.0
    %518 = vmatprep.subr.mxu0 0.0
    %519 = vmatpush1.msra.mxu0 0.0
    %520 = vmatprep.subr.mxu0 0.0
    %521 = vmatpush1.msra.mxu0 0.0
    %522 = vmatprep.subr.mxu0 0.0
    %523 = vmatpush1.msra.mxu0 0.0
    %524 = vmatprep.subr.mxu0 0.0
    %525 = vmatpush1.msra.mxu0 0.0
    %526 = vmatprep.subr.mxu0 0.0
    %527 = vmatpush1.msra.mxu0 0.0
    %528 = vmatprep.subr.mxu0 0.0
    %529 = vmatpush1.msra.mxu0 0.0
    %530 = vmatprep.subr.mxu0 0.0
    %531 = vmatpush1.msra.mxu0 0.0
    %532 = vmatprep.subr.mxu0 0.0
    %533 = vmatpush1.msra.mxu0 0.0
    %534 = vmatprep.subr.mxu0 0.0
    %535 = vmatpush1.msra.mxu0 0.0
    %536 = vmatprep.subr.mxu0 0.0
    %537 = vmatpush1.msra.mxu0 0.0
    %538 = vmatprep.subr.mxu0 0.0
    %539 = vmatpush1.msra.mxu0 0.0
    %540 = vmatprep.subr.mxu0 0.0
    %541 = vmatpush1.msra.mxu0 0.0
    %542 = vmatprep.subr.mxu0 0.0
    %543 = vmatpush1.msra.mxu0 0.0
    %544 = vmatprep.subr.mxu0 0.0
    %545 = vmatpush1.msra.mxu0 0.0
    %546 = vmatprep.subr.mxu0 0.0
    %547 = vmatpush1.msra.mxu0 0.0
    %548 = vmatprep.subr.mxu0 0.0
    %549 = vmatpush1.msra.mxu0 0.0
    %550 = vmatprep.subr.mxu0 0.0
    %551 = vmatpush1.msra.mxu0 0.0
    %552 = vmatprep.subr.mxu0 0.0
    %553 = vmatpush1.msra.mxu0 0.0
    %554 = vmatprep.subr.mxu0 0.0
    %555 = vmatpush1.msra.mxu0 0.0
    %556 = vmatprep.subr.mxu0 0.0
    %557 = vmatpush1.msra.mxu0 0.0
    %558 = vmatprep.mubr.f32.mxu0 0.0
    %559 = vmatmul.mubr.f32.gmra.mrb[0].mxu0 %v489
    %v560 = vpop.f32.mrb[0].mxu0
    %v561 = vadd.f32 0.0, %v560
    %v562 = vpop.f32.mrb[0].mxu0
    %563 = vmatprep.mubr.f32.mxu0 0.0
    %564 = vmatmul.mubr.f32.gmra.mrb[0].mxu0 %v492
    %v565 = vpop.f32.mrb[0].mxu0
    %v566 = vadd.f32 0.0, %v565
    %v567 = vpop.f32.mrb[0].mxu0
    %568 = vdwg.mxu0
    %v569 = vmul.f32 %v480, %v403
    %v570 = vmul.f32 %v485, %v404
    %v571 = vmul.f32 %v561, %v405
    %v572 = vmul.f32 %v566, %v406
    %v573 = vadd.f32 %v569, %v377
    %v574 = vadd.f32 %v570, %v377
    %v575 = vadd.f32 %v571, %v377
    %v576 = vadd.f32 %v572, %v377
    %v577 = vxor.u32 %v573, 2147483648
    %v578 = vxor.u32 %v574, 2147483648
    %v579 = vxor.u32 %v575, 2147483648
    %v580 = vxor.u32 %v576, 2147483648
    %v581 = vmul.f32 %v577, 1.442695
    %v582 = vpow.pop %v581
    %v583 = vmul.f32 %v578, 1.442695
    %v584 = vpow.pop %v583
    %v585 = vmul.f32 %v579, 1.442695
    %v586 = vpow.pop %v585
    %v587 = vmul.f32 %v580, 1.442695
    %v588 = vpow.pop %v587
    %v589 = vadd.f32 %v582, 1.0
    %v590 = vadd.f32 %v584, 1.0
    %v591 = vadd.f32 %v586, 1.0
    %v592 = vadd.f32 %v588, 1.0
    %v593 = vrcp.pop %v589
    %v594 = vmul.f32 1.0, %v593
    %v595 = vrcp.pop %v590
    %v596 = vmul.f32 1.0, %v595
    %v597 = vrcp.pop %v591
    %v598 = vmul.f32 1.0, %v597
    %v599 = vrcp.pop %v592
    %v600 = vmul.f32 1.0, %v599
    %v601 = vmul.f32 %v594, 0.2
    %v602 = vmul.f32 %v596, 0.2
    %v603 = vmul.f32 %v598, 0.2
    %v604 = vmul.f32 %v600, 0.2
    %v605 = vsub.f32 1.0, %v601
    %v606 = vsub.f32 1.0, %v602
    %v607 = vsub.f32 1.0, %v603
    %v608 = vsub.f32 1.0, %v604
    %v609 = vmul.f32 %v605, %v379
    %v610 = vmul.f32 %v606, %v380
    %v611 = vmul.f32 %v607, %v381
    %v612 = vmul.f32 %v608, %v382
    %v613 = vmul.f32 %v601, %v573
    %v614 = vmul.f32 %v602, %v574
    %v615 = vmul.f32 %v603, %v575
    %v616 = vmul.f32 %v604, %v576
    %v617 = vadd.f32 %v609, %v613
    %v618 = vadd.f32 %v610, %v614
    %v619 = vadd.f32 %v611, %v615
    %v620 = vadd.f32 %v612, %v616
    %v621 = vtanh.pop %v617
    %v622 = vtanh.pop %v618
    %v623 = vtanh.pop %v619
    %v624 = vtanh.pop %v620
    %625 = vst [vmem:[#allocation10] sm:$0xff] %v621
    %626 = vst [vmem:[#allocation10 + $0x8] sm:$0xff] %v622
    %627 = vst [vmem:[#allocation10 + $0x10] sm:$0xff] %v623
    %628 = vst [vmem:[#allocation10 + $0x18] sm:$0xff] %v624
    // Predicated region
    $region38: #{tpu_custom_call.1} parent=1 // pred_check
      _
    $region39: #{tpu_custom_call.1} parent=1 // pred_check_branch
      %630 = sbr.rel (0) target = $region41
    $region40: #{tpu_custom_call.1} parent=1 // pred_region
      %s632 = ssub.s32 512, 512
      %633 = vsyncadd [#allocation4], %s632
      %s634 = sshll.u32 [#allocation10], 4
      %s635 = int_to_ptr.vmem [resolvable:$true] %s634
      %640 = dma.vmem_to_hbm [thread:$0]  %s635, 512, %s5, [#allocation4], 128, 128, 8
    $region41: #{tpu_custom_call.1} parent=1 // pred_fallthru
      _
    // Predicated region
    $region42: #{tpu_custom_call.1} parent=1 // pred_check
      _
    $region43: #{tpu_custom_call.1} parent=1 // pred_check_branch
      %642 = sbr.rel (0) target = $region45
    $region44: #{tpu_custom_call.1} parent=1 // pred_region
      %643 = dma.done [#allocation4], 512
    $region45: #{tpu_custom_call.1} parent=1 // pred_fallthru
      _
    %644 = vsyncpa [#allocation3], 1
    %645 = vsyncpa [#allocation6], 1
    %646 = vsyncpa [#allocation9], 1
    %647 = vsyncpa [#allocation4], 1

</llo_original>
